<compile_context>
chip_gen: v5e
topology: v5e:2x2
jax: 0.10.0
libtpu: 0.0.40
codegen_flags: <defaults>
</compile_context>

<pallas_src>
import jax
import jax.numpy as jnp
from jax.experimental import pallas as pl
from jax.experimental.pallas import tpu as pltpu

LANE = 128     # lane (last-dim) granularity
SUBLANE = 8    # sublane (second-to-last dim) granularity


def _round_up(n, m):
    return ((n + m - 1) // m) * m


# ----------------------------------------------------------------------------
# Kernel: one batch tile of the full 3-layer MLP. Weights/biases use constant
# index maps so they are DMA'd once and stay resident in VMEM across the grid.
# x arrives at its true (tile_b, k_in) f32 shape; the bf16 cast is done here.
# ----------------------------------------------------------------------------
def _mlp_kernel(x_ref, w1_ref, b1_ref, w2_ref, b2_ref, w3_ref, b3_ref, o_ref):
    x = x_ref[...].astype(jnp.bfloat16)                              # (TB, K_in)
    h1 = jnp.dot(x, w1_ref[...], preferred_element_type=jnp.float32) + b1_ref[...]
    h1 = jnp.maximum(h1, 0.0).astype(jnp.bfloat16)                   # ReLU -> bf16
    h2 = jnp.dot(h1, w2_ref[...], preferred_element_type=jnp.float32) + b2_ref[...]
    h2 = jnp.maximum(h2, 0.0).astype(jnp.bfloat16)                   # ReLU -> bf16
    y = jnp.dot(h2, w3_ref[...], preferred_element_type=jnp.float32) + b3_ref[...]
    o_ref[...] = y.astype(o_ref.dtype)


# ----------------------------------------------------------------------------
# Parameter packing: output feature dims are zero-padded to 128 lanes (so every
# intermediate / output store is lane-dense, unmasked). The first layer's
# contraction dim keeps its true size k_in so the raw input needs no lane pad.
# Zero padding is exact: padded weight rows/cols and bias entries are 0 and
# relu(0) = 0, so padded lanes stay 0 through every layer.
# ----------------------------------------------------------------------------
def pack_params(params):
    w1, b1 = params["w1"], params["b1"]
    w2, b2 = params["w2"], params["b2"]
    w3, b3 = params["w3"], params["b3"]
    k_in, h1 = w1.shape
    _, h2 = w2.shape
    _, f = w3.shape
    h1p, h2p, fp = (_round_up(d, LANE) for d in (h1, h2, f))

    def pad2(a, r, c):
        return jnp.pad(a, ((0, r - a.shape[0]), (0, c - a.shape[1])))

    return {
        "w1": pad2(w1, k_in, h1p).astype(jnp.bfloat16),   # K kept at true k_in
        "b1": pad2(b1, 1, h1p).astype(jnp.float32),
        "w2": pad2(w2, h1p, h2p).astype(jnp.bfloat16),
        "b2": pad2(b2, 1, h2p).astype(jnp.float32),
        "w3": pad2(w3, h2p, fp).astype(jnp.bfloat16),
        "b3": pad2(b3, 1, fp).astype(jnp.float32),
        "dims": (k_in, h1, h2, f),
        "pdims": (h1p, h2p, fp),
    }


def reconstruction_layers_forward(x, packed, *, max_tile_b=1024,
                                  out_dtype=jnp.bfloat16):
    """x: (B, number_of_targets * capsule_dimensions) or 1-D (K_in,).
    Returns (B, node_feature_num); for B == 1 this is (1, F), matching the
    PyTorch module's .view(1, number_of_features)."""
    if x.ndim == 1:
        x = x[None, :]
    b, k_in = x.shape
    k_true, h1, h2, f = packed["dims"]
    h1p, h2p, fp = packed["pdims"]
    assert k_in == k_true, "input feature dim mismatch"

    # --- batch tiling -------------------------------------------------------
    # Sublane-aligned tiles; target at least two grid steps so 'parallel' can
    # use both v7x TensorCores; tiles >= 256 are floored to a 256 multiple.
    b_al = _round_up(b, SUBLANE)
    if b_al <= SUBLANE:
        tile_b = b_al
    else:
        tile_b = min(max_tile_b, _round_up(pl.cdiv(b_al, 2), SUBLANE))
        if tile_b >= 256:
            tile_b = (tile_b // 256) * 256
    b_pad = _round_up(b_al, tile_b)
    grid = (b_pad // tile_b,)

    # Batch-row pad only (no lane pad, no dtype cast in the wrapper).
    if b_pad != b:
        x = jnp.pad(x, ((0, b_pad - b), (0, 0)))

    flops = 2 * b_pad * (k_in * h1p + h1p * h2p + h2p * fp)
    bytes_accessed = (
        b_pad * k_in * x.dtype.itemsize
        + (packed["w1"].size + packed["w2"].size + packed["w3"].size) * 2
        + (h1p + h2p + fp) * 4
        + b_pad * fp * jnp.dtype(out_dtype).itemsize
    )

    out = pl.pallas_call(
        _mlp_kernel,
        out_shape=jax.ShapeDtypeStruct((b_pad, fp), out_dtype),
        grid=grid,
        in_specs=[
            pl.BlockSpec((tile_b, k_in), lambda i: (i, 0)),  # x: tiled over batch
            pl.BlockSpec((k_in, h1p), lambda i: (0, 0)),     # weights/biases: resident
            pl.BlockSpec((1, h1p), lambda i: (0, 0)),
            pl.BlockSpec((h1p, h2p), lambda i: (0, 0)),
            pl.BlockSpec((1, h2p), lambda i: (0, 0)),
            pl.BlockSpec((h2p, fp), lambda i: (0, 0)),
            pl.BlockSpec((1, fp), lambda i: (0, 0)),
        ],
        out_specs=pl.BlockSpec((tile_b, fp), lambda i: (i, 0)),
        compiler_params=pltpu.CompilerParams(
            dimension_semantics=("parallel",)),
        cost_estimate=pl.CostEstimate(
            flops=flops, transcendentals=0, bytes_accessed=bytes_accessed),
    )(x, packed["w1"], packed["b1"], packed["w2"], packed["b2"],
      packed["w3"], packed["b3"])

    # Slice back to the true (B, F) shape. If the consumer can accept the
    # padded (b_pad, fp) slab, returning `out` directly saves one HBM pass.
    return out[:b, :f]


# ----------------------------------------------------------------------------
# Init (matches PyTorch Linear shapes; weights stored pre-transposed (in, out)).
# ----------------------------------------------------------------------------
def init_params(key, node_feature_num, number_of_targets, capsule_dimensions):
    in_dim = number_of_targets * capsule_dimensions
    h1 = int(node_feature_num * 2 / 3)
    h2 = int(node_feature_num * 3 / 2)
    k = jax.random.split(key, 6)

    def lin(kw, kb, fan_in, fan_out):
        bound = 1.0 / jnp.sqrt(fan_in)
        w = jax.random.uniform(kw, (fan_in, fan_out), jnp.float32, -bound, bound)
        b = jax.random.uniform(kb, (1, fan_out), jnp.float32, -bound, bound)
        return w, b

    w1, b1 = lin(k[0], k[1], in_dim, h1)
    w2, b2 = lin(k[2], k[3], h1, h2)
    w3, b3 = lin(k[4], k[5], h2, node_feature_num)
    return {"w1": w1, "b1": b1, "w2": w2, "b2": b2, "w3": w3, "b3": b3}


def _reference(x, packed, out_dtype=jnp.bfloat16):
    """Pure-JAX reference using the same bf16-quantized weights / activations
    with f32 accumulation (matches kernel math), cast to the kernel out dtype."""
    k_in, h1, h2, f = packed["dims"]
    f32 = jnp.float32
    xw = x.astype(jnp.bfloat16).astype(f32)
    w1 = packed["w1"].astype(f32)[:, :h1]
    w2 = packed["w2"].astype(f32)[:h1, :h2]
    w3 = packed["w3"].astype(f32)[:h2, :f]
    b1 = packed["b1"][:, :h1]
    b2 = packed["b2"][:, :h2]
    b3 = packed["b3"][:, :f]
    a1 = jnp.maximum(xw @ w1 + b1, 0.0).astype(jnp.bfloat16).astype(f32)
    a2 = jnp.maximum(a1 @ w2 + b2, 0.0).astype(jnp.bfloat16).astype(f32)
    y = a2 @ w3 + b3
    return y.astype(out_dtype).astype(f32)


if __name__ == "__main__":
    # Module-consistent small shapes.
    node_feature_num = 48       # -> hidden1 = 32, hidden2 = 72
    number_of_targets = 2
    capsule_dimensions = 8      # -> input dim = 16
    in_dim = number_of_targets * capsule_dimensions

    key = jax.random.PRNGKey(0)
    k_params, k_x1, k_xb, k_xr = jax.random.split(key, 4)
    params = init_params(k_params, node_feature_num, number_of_targets,
                         capsule_dimensions)
    packed = pack_params(params)   # pack once, reuse across calls

    # 1) Original module semantics: single flat input -> (1, F).
    x1 = jax.random.normal(k_x1, (in_dim,), jnp.float32)
    y1 = jax.block_until_ready(reconstruction_layers_forward(x1, packed))
    assert y1.shape == (1, node_feature_num)
    assert jnp.allclose(y1.astype(jnp.float32), _reference(x1[None, :], packed),
                        atol=1e-2, rtol=1e-2)

    # 1b) f32-output path (exact module output dtype), tighter tolerance.
    y1f = jax.block_until_ready(
        reconstruction_layers_forward(x1, packed, out_dtype=jnp.float32))
    assert jnp.allclose(y1f, _reference(x1[None, :], packed, out_dtype=jnp.float32),
                        atol=1e-3, rtol=1e-3)

    # 2) Batched paths (grid of >= 2 steps -> both TCs on v7x; batch-pad path).
    for batch, kx in ((16, k_xb), (37, k_xr)):
        xb = jax.random.normal(kx, (batch, in_dim), jnp.float32)
        yb = jax.block_until_ready(reconstruction_layers_forward(xb, packed))
        assert yb.shape == (batch, node_feature_num)
        assert jnp.allclose(yb.astype(jnp.float32), _reference(xb, packed),
                            atol=1e-2, rtol=1e-2)

    print("KERNEL_OK")
</pallas_src>

<mosaic_0001>
module attributes {stable_mosaic.version = 11 : i64} {
  func.func @_mlp_kernel(%arg0: i32, %arg1: memref<8x16xf32, #tpu.memory_space<vmem>>, %arg2: memref<16x128xbf16, #tpu.memory_space<vmem>>, %arg3: memref<1x128xf32, #tpu.memory_space<vmem>>, %arg4: memref<128x128xbf16, #tpu.memory_space<vmem>>, %arg5: memref<1x128xf32, #tpu.memory_space<vmem>>, %arg6: memref<128x128xbf16, #tpu.memory_space<vmem>>, %arg7: memref<1x128xf32, #tpu.memory_space<vmem>>, %arg8: memref<8x128xbf16, #tpu.memory_space<vmem>>) attributes {dimension_semantics = [#tpu.dimension_semantics<parallel>], iteration_bounds = array<i64: 1>, scalar_prefetch = 0 : i64, scratch_operands = 0 : i64, tpu.core_type = #tpu.core_type<tc>, window_params = [{transform_indices = @transform_0, window_bounds = array<i64: 8, 16>}, {pipeline_mode = #tpu.pipeline_mode<synchronous>, transform_indices = @transform_1, window_bounds = array<i64: 16, 128>}, {pipeline_mode = #tpu.pipeline_mode<synchronous>, transform_indices = @transform_2, window_bounds = array<i64: 1, 128>}, {pipeline_mode = #tpu.pipeline_mode<synchronous>, transform_indices = @transform_3, window_bounds = array<i64: 128, 128>}, {pipeline_mode = #tpu.pipeline_mode<synchronous>, transform_indices = @transform_4, window_bounds = array<i64: 1, 128>}, {pipeline_mode = #tpu.pipeline_mode<synchronous>, transform_indices = @transform_5, window_bounds = array<i64: 128, 128>}, {pipeline_mode = #tpu.pipeline_mode<synchronous>, transform_indices = @transform_6, window_bounds = array<i64: 1, 128>}, {transform_indices = @transform_7, window_bounds = array<i64: 8, 128>}]} {
    %c0 = arith.constant 0 : index
    %c0_0 = arith.constant 0 : index
    %0 = vector.load %arg1[%c0, %c0_0] : memref<8x16xf32, #tpu.memory_space<vmem>>, vector<8x16xf32>
    %1 = arith.truncf %0 : vector<8x16xf32> to vector<8x16xbf16>
    %c0_1 = arith.constant 0 : index
    %c0_2 = arith.constant 0 : index
    %2 = vector.load %arg2[%c0_1, %c0_2] : memref<16x128xbf16, #tpu.memory_space<vmem>>, vector<16x128xbf16>
    %cst = arith.constant dense<0.000000e+00> : vector<8x128xf32>
    %3 = tpu.matmul %1, %2, %cst {dimension_numbers = #tpu.dot_dimension_numbers<[1], [0], [0], [1], [0, 0, 1, 1], [], []>} : vector<8x16xbf16>, vector<16x128xbf16>, vector<8x128xf32> -> vector<8x128xf32>
    %c0_3 = arith.constant 0 : index
    %c0_4 = arith.constant 0 : index
    %4 = vector.load %arg3[%c0_3, %c0_4] : memref<1x128xf32, #tpu.memory_space<vmem>>, vector<1x128xf32>
    %5 = vector.broadcast %4 : vector<1x128xf32> to vector<8x128xf32>
    %6 = arith.addf %3, %5 : vector<8x128xf32>
    %cst_5 = arith.constant 0.000000e+00 : f32
    %7 = vector.broadcast %cst_5 : f32 to vector<8x128xf32>
    %8 = arith.maximumf %6, %7 : vector<8x128xf32>
    %9 = arith.truncf %8 : vector<8x128xf32> to vector<8x128xbf16>
    %c0_6 = arith.constant 0 : index
    %c0_7 = arith.constant 0 : index
    %10 = vector.load %arg4[%c0_6, %c0_7] : memref<128x128xbf16, #tpu.memory_space<vmem>>, vector<128x128xbf16>
    %cst_8 = arith.constant dense<0.000000e+00> : vector<8x128xf32>
    %11 = tpu.matmul %9, %10, %cst_8 {dimension_numbers = #tpu.dot_dimension_numbers<[1], [0], [0], [1], [0, 0, 1, 1], [], []>} : vector<8x128xbf16>, vector<128x128xbf16>, vector<8x128xf32> -> vector<8x128xf32>
    %c0_9 = arith.constant 0 : index
    %c0_10 = arith.constant 0 : index
    %12 = vector.load %arg5[%c0_9, %c0_10] : memref<1x128xf32, #tpu.memory_space<vmem>>, vector<1x128xf32>
    %13 = vector.broadcast %12 : vector<1x128xf32> to vector<8x128xf32>
    %14 = arith.addf %11, %13 : vector<8x128xf32>
    %cst_11 = arith.constant 0.000000e+00 : f32
    %15 = vector.broadcast %cst_11 : f32 to vector<8x128xf32>
    %16 = arith.maximumf %14, %15 : vector<8x128xf32>
    %17 = arith.truncf %16 : vector<8x128xf32> to vector<8x128xbf16>
    %c0_12 = arith.constant 0 : index
    %c0_13 = arith.constant 0 : index
    %18 = vector.load %arg6[%c0_12, %c0_13] : memref<128x128xbf16, #tpu.memory_space<vmem>>, vector<128x128xbf16>
    %cst_14 = arith.constant dense<0.000000e+00> : vector<8x128xf32>
    %19 = tpu.matmul %17, %18, %cst_14 {dimension_numbers = #tpu.dot_dimension_numbers<[1], [0], [0], [1], [0, 0, 1, 1], [], []>} : vector<8x128xbf16>, vector<128x128xbf16>, vector<8x128xf32> -> vector<8x128xf32>
    %c0_15 = arith.constant 0 : index
    %c0_16 = arith.constant 0 : index
    %20 = vector.load %arg7[%c0_15, %c0_16] : memref<1x128xf32, #tpu.memory_space<vmem>>, vector<1x128xf32>
    %21 = vector.broadcast %20 : vector<1x128xf32> to vector<8x128xf32>
    %22 = arith.addf %19, %21 : vector<8x128xf32>
    %23 = arith.truncf %22 : vector<8x128xf32> to vector<8x128xbf16>
    %c0_17 = arith.constant 0 : index
    %c0_18 = arith.constant 0 : index
    %24 = vector.load %arg8[%c0_17, %c0_18] : memref<8x128xbf16, #tpu.memory_space<vmem>>, vector<8x128xbf16>
    tpu.vector_store %arg8[%c0_17, %c0_18], %23 {strides = array<i32>} : memref<8x128xbf16, #tpu.memory_space<vmem>>, vector<8x128xbf16>,
    return
  }
  func.func @transform_0(%arg0: i32) -> (i32, i32) {
    %c0_i32 = arith.constant 0 : i32
    %c0_i32_0 = arith.constant 0 : i32
    return %arg0, %c0_i32 : i32, i32
  }
  func.func @transform_1(%arg0: i32) -> (i32, i32) {
    %c0_i32 = arith.constant 0 : i32
    %c0_i32_0 = arith.constant 0 : i32
    %c0_i32_1 = arith.constant 0 : i32
    return %c0_i32, %c0_i32_0 : i32, i32
  }
  func.func @transform_2(%arg0: i32) -> (i32, i32) {
    %c0_i32 = arith.constant 0 : i32
    %c0_i32_0 = arith.constant 0 : i32
    %c0_i32_1 = arith.constant 0 : i32
    return %c0_i32, %c0_i32_0 : i32, i32
  }
  func.func @transform_3(%arg0: i32) -> (i32, i32) {
    %c0_i32 = arith.constant 0 : i32
    %c0_i32_0 = arith.constant 0 : i32
    %c0_i32_1 = arith.constant 0 : i32
    return %c0_i32, %c0_i32_0 : i32, i32
  }
  func.func @transform_4(%arg0: i32) -> (i32, i32) {
    %c0_i32 = arith.constant 0 : i32
    %c0_i32_0 = arith.constant 0 : i32
    %c0_i32_1 = arith.constant 0 : i32
    return %c0_i32, %c0_i32_0 : i32, i32
  }
  func.func @transform_5(%arg0: i32) -> (i32, i32) {
    %c0_i32 = arith.constant 0 : i32
    %c0_i32_0 = arith.constant 0 : i32
    %c0_i32_1 = arith.constant 0 : i32
    return %c0_i32, %c0_i32_0 : i32, i32
  }
  func.func @transform_6(%arg0: i32) -> (i32, i32) {
    %c0_i32 = arith.constant 0 : i32
    %c0_i32_0 = arith.constant 0 : i32
    %c0_i32_1 = arith.constant 0 : i32
    return %c0_i32, %c0_i32_0 : i32, i32
  }
  func.func @transform_7(%arg0: i32) -> (i32, i32) {
    %c0_i32 = arith.constant 0 : i32
    %c0_i32_0 = arith.constant 0 : i32
    return %arg0, %c0_i32 : i32, i32
  }
}

</mosaic_0001>

<llo_original>
// kernel: tpu_custom_call.1
$region0: #{tpu_custom_call.1}
  #allocation0 [shape = 'u32[]', space=smem, size = 0x4, offset = 0x4, fixed_abs, tag = 'smem constant byte address 0x4 - core index']
  #allocation1 [shape = 'u32[72,128]{1,0:T(1,128)}', space=vmem, size = 0x9000, scoped, tag = 'internal scratch']
  %s0 = inlined_call_operand.hbm [shape: f32[8,16], index: 0, kind: input, shape index: {}]
  %s1 = inlined_call_operand.hbm [shape: bf16[16,128], index: 1, kind: input, shape index: {}]
  %s2 = inlined_call_operand.vmem [shape: f32[1,128], index: 2, kind: input, shape index: {}]
  %s3 = inlined_call_operand.hbm [shape: bf16[128,128], index: 3, kind: input, shape index: {}]
  %s4 = inlined_call_operand.vmem [shape: f32[1,128], index: 4, kind: input, shape index: {}]
  %s5 = inlined_call_operand.hbm [shape: bf16[128,128], index: 5, kind: input, shape index: {}]
  %s6 = inlined_call_operand.vmem [shape: f32[1,128], index: 6, kind: input, shape index: {}]
  %s7 = inlined_call_operand.hbm [shape: bf16[8,128], index: 7, kind: output, shape index: {}]
  %s8 = sld [smem:[#allocation0]]
  $region54: #{tpu_custom_call.1} parent=0
    _
  %s10 = ssub.s32 1, %s8
  %s11 = scalar_select 0, %s10, %s8
  $region1: #{tpu_custom_call.1} parent=0
    #allocation2 [shape = 'u8[4096]{0}', space=vmem, size = 0x1000, scoped, tag = 'input window, operand 0, single buffered']
    #allocation3 [shape = 's32[1]{0}', space=sflag, size = 0x4, scoped, tag = 'scoped memory for tpu_custom_call.1']
    #allocation4 [shape = 's32[1]{0}', space=sflag, size = 0x4, scoped, tag = 'scoped memory for tpu_custom_call.1']
    #allocation5 [shape = 'u8[4096]{0}', space=vmem, size = 0x1000, scoped, tag = 'input window, operand 1, single buffered']
    #allocation6 [shape = 's32[1]{0}', space=sflag, size = 0x4, scoped, tag = 'scoped memory for tpu_custom_call.1']
    #allocation7 [shape = 'u8[32768]{0}', space=vmem, size = 0x8000, scoped, tag = 'input window, operand 3, single buffered']
    #allocation8 [shape = 'u8[32768]{0}', space=vmem, size = 0x8000, scoped, tag = 'input window, operand 5, single buffered']
    #allocation9 [shape = 's32[1]{0}', space=sflag, size = 0x4, scoped, tag = 'scoped memory for tpu_custom_call.1']
    #allocation10 [shape = 'u8[2048]{0}', space=vmem, size = 0x800, scoped, tag = 'output window, operand 0, single buffered']
    %12 = vsyncpa [#allocation3], 0
    %13 = vsyncpa [#allocation6], 0
    %14 = vsyncpa [#allocation9], 0
    %15 = vsyncpa [#allocation4], 0
    // Predicated region
    $region2: #{tpu_custom_call.1} parent=1 // pred_check
      _
    $region3: #{tpu_custom_call.1} parent=1 // pred_check_branch
      %17 = sbr.rel (0) target = $region5
    $region4: #{tpu_custom_call.1} parent=1 // pred_region
      %19 = vsyncadd [#allocation3], 0
      %s21 = sshll.u32 %s0, 4
      %s22 = int_to_ptr.hbm [resolvable:$true] %s21
      %s23 = sshll.u32 [#allocation2], 4
      %s24 = int_to_ptr.vmem [resolvable:$true] %s23
      %26 = dma.hbm_to_vmem [thread:$0]  %s22, 128, %s24, [#allocation3]
    $region5: #{tpu_custom_call.1} parent=1 // pred_fallthru
      _
    // Predicated region
    $region6: #{tpu_custom_call.1} parent=1 // pred_check
      _
    $region7: #{tpu_custom_call.1} parent=1 // pred_check_branch
      %28 = sbr.rel (0) target = $region9
    $region8: #{tpu_custom_call.1} parent=1 // pred_region
      %30 = vsyncadd [#allocation6], 0
      %s31 = sshll.u32 %s1, 4
      %s32 = int_to_ptr.hbm [resolvable:$true] %s31
      %s33 = sshll.u32 [#allocation5], 4
      %s34 = int_to_ptr.vmem [resolvable:$true] %s33
      %39 = dma.hbm_to_vmem [thread:$0]  %s32, 128, %s34, [#allocation6], 64, 64, 4
    $region9: #{tpu_custom_call.1} parent=1 // pred_fallthru
      _
    // Predicated region
    $region10: #{tpu_custom_call.1} parent=1 // pred_check
      _
    $region11: #{tpu_custom_call.1} parent=1 // pred_check_branch
      %41 = sbr.rel (0) target = $region13
    $region12: #{tpu_custom_call.1} parent=1 // pred_region
      _
    $region13: #{tpu_custom_call.1} parent=1 // pred_fallthru
      _
    // Predicated region
    $region14: #{tpu_custom_call.1} parent=1 // pred_check
      _
    $region15: #{tpu_custom_call.1} parent=1 // pred_check_branch
      %43 = sbr.rel (0) target = $region17
    $region16: #{tpu_custom_call.1} parent=1 // pred_region
      %45 = vsyncadd [#allocation6], 0
      %s46 = sshll.u32 %s3, 4
      %s47 = int_to_ptr.hbm [resolvable:$true] %s46
      %s48 = sshll.u32 [#allocation7], 4
      %s49 = int_to_ptr.vmem [resolvable:$true] %s48
      %54 = dma.hbm_to_vmem [thread:$0]  %s47, 1024, %s49, [#allocation6], 64, 64, 4
    $region17: #{tpu_custom_call.1} parent=1 // pred_fallthru
      _
    // Predicated region
    $region18: #{tpu_custom_call.1} parent=1 // pred_check
      _
    $region19: #{tpu_custom_call.1} parent=1 // pred_check_branch
      %56 = sbr.rel (0) target = $region21
    $region20: #{tpu_custom_call.1} parent=1 // pred_region
      _
    $region21: #{tpu_custom_call.1} parent=1 // pred_fallthru
      _
    // Predicated region
    $region22: #{tpu_custom_call.1} parent=1 // pred_check
      _
    $region23: #{tpu_custom_call.1} parent=1 // pred_check_branch
      %58 = sbr.rel (0) target = $region25
    $region24: #{tpu_custom_call.1} parent=1 // pred_region
      %60 = vsyncadd [#allocation9], 0
      %s61 = sshll.u32 %s5, 4
      %s62 = int_to_ptr.hbm [resolvable:$true] %s61
      %s63 = sshll.u32 [#allocation8], 4
      %s64 = int_to_ptr.vmem [resolvable:$true] %s63
      %69 = dma.hbm_to_vmem [thread:$0]  %s62, 1024, %s64, [#allocation9], 64, 64, 4
    $region25: #{tpu_custom_call.1} parent=1 // pred_fallthru
      _
    // Predicated region
    $region26: #{tpu_custom_call.1} parent=1 // pred_check
      _
    $region27: #{tpu_custom_call.1} parent=1 // pred_check_branch
      %71 = sbr.rel (0) target = $region29
    $region28: #{tpu_custom_call.1} parent=1 // pred_region
      _
    $region29: #{tpu_custom_call.1} parent=1 // pred_fallthru
      _
    // Predicated region
    $region30: #{tpu_custom_call.1} parent=1 // pred_check
      _
    $region31: #{tpu_custom_call.1} parent=1 // pred_check_branch
      %73 = sbr.rel (0) target = $region33
    $region32: #{tpu_custom_call.1} parent=1 // pred_region
      %75 = dma.done [#allocation3], 128
    $region33: #{tpu_custom_call.1} parent=1 // pred_fallthru
      _
    // Predicated region
    $region34: #{tpu_custom_call.1} parent=1 // pred_check
      _
    $region35: #{tpu_custom_call.1} parent=1 // pred_check_branch
      %77 = sbr.rel (0) target = $region37
    $region36: #{tpu_custom_call.1} parent=1 // pred_region
      %79 = dma.done [#allocation6], 128
    $region37: #{tpu_custom_call.1} parent=1 // pred_fallthru
      _
    // Predicated region
    $region38: #{tpu_custom_call.1} parent=1 // pred_check
      _
    $region39: #{tpu_custom_call.1} parent=1 // pred_check_branch
      %81 = sbr.rel (0) target = $region41
    $region40: #{tpu_custom_call.1} parent=1 // pred_region
      %83 = dma.done [#allocation6], 1024
    $region41: #{tpu_custom_call.1} parent=1 // pred_fallthru
      _
    // Predicated region
    $region42: #{tpu_custom_call.1} parent=1 // pred_check
      _
    $region43: #{tpu_custom_call.1} parent=1 // pred_check_branch
      %85 = sbr.rel (0) target = $region45
    $region44: #{tpu_custom_call.1} parent=1 // pred_region
      %87 = dma.done [#allocation9], 1024
    $region45: #{tpu_custom_call.1} parent=1 // pred_fallthru
      _
    %v89 = vld [vmem:[#allocation2] sm:$0xff]
    %v90 = vpack.c.bf16 %v89, %v89
    %v91 = vld [vmem:[#allocation5] sm:$0xf]
    %v92 = vld [vmem:[#allocation5 + $0x4] sm:$0xf]
    %v93 = vld [vmem:[%s2] sm:$0x1]
    %v95 = vperm.slane %v93, 0
    %v99 = vunpack.c.l.b16 %v91
    %v100 = vunpack.c.l.b16 %v92
    %v101 = vpack.c.b16 %v100, %v99
    %vm103 = vcmask 130048
    %v105 = vsel %vm103, %v90, 0
    %107 = vmatpush.bf16.msra.mxu0 0
    %108 = vmatpush.bf16.msra.mxu0 0
    %109 = vmatpush.bf16.msra.mxu0 0
    %110 = vmatpush.bf16.msra.mxu0 0
    %111 = vmatpush.bf16.msra.mxu0 0
    %112 = vmatpush.bf16.msra.mxu0 0
    %113 = vmatpush.bf16.msra.mxu0 0
    %114 = vmatpush.bf16.msra.mxu0 %v101
    %115 = vmatmul.bf16.gmra.mxu0 %v105
    %v116 = vpop.f32.mrf.mxu0
    %v117 = vadd.f32 %v95, %v116
    %v118 = vpop.f32.mrf.mxu0
    %119 = vdwg.mxu0
    %v120 = vmax.f32 %v117, 0.0
    %v121 = vpack.c.bf16 %v120, %v120
    %v122 = vld [vmem:[#allocation7] sm:$0xf]
    %v123 = vld [vmem:[#allocation7 + $0x4] sm:$0xf]
    %v124 = vld [vmem:[#allocation7 + $0x8] sm:$0xf]
    %v125 = vld [vmem:[#allocation7 + $0xc] sm:$0xf]
    %v126 = vld [vmem:[#allocation7 + $0x10] sm:$0xf]
    %v127 = vld [vmem:[#allocation7 + $0x14] sm:$0xf]
    %v128 = vld [vmem:[#allocation7 + $0x18] sm:$0xf]
    %v129 = vld [vmem:[#allocation7 + $0x1c] sm:$0xf]
    %v130 = vld [vmem:[#allocation7 + $0x20] sm:$0xf]
    %v131 = vld [vmem:[#allocation7 + $0x24] sm:$0xf]
    %v132 = vld [vmem:[#allocation7 + $0x28] sm:$0xf]
    %v133 = vld [vmem:[#allocation7 + $0x2c] sm:$0xf]
    %v134 = vld [vmem:[#allocation7 + $0x30] sm:$0xf]
    %v135 = vld [vmem:[#allocation7 + $0x34] sm:$0xf]
    %v136 = vld [vmem:[#allocation7 + $0x38] sm:$0xf]
    %v137 = vld [vmem:[#allocation7 + $0x3c] sm:$0xf]
    %v138 = vld [vmem:[%s4] sm:$0x1]
    %v140 = vperm.slane %v138, 0
    %v158 = vunpack.c.l.b16 %v122
    %v159 = vunpack.c.l.b16 %v123
    %v160 = vunpack.c.l.b16 %v124
    %v161 = vunpack.c.l.b16 %v125
    %v162 = vunpack.c.l.b16 %v126
    %v163 = vunpack.c.l.b16 %v127
    %v164 = vunpack.c.l.b16 %v128
    %v165 = vunpack.c.l.b16 %v129
    %v166 = vunpack.c.l.b16 %v130
    %v167 = vunpack.c.l.b16 %v131
    %v168 = vunpack.c.l.b16 %v132
    %v169 = vunpack.c.l.b16 %v133
    %v170 = vunpack.c.l.b16 %v134
    %v171 = vunpack.c.l.b16 %v135
    %v172 = vunpack.c.l.b16 %v136
    %v173 = vunpack.c.l.b16 %v137
    %v174 = vpack.c.b16 %v159, %v158
    %v175 = vpack.c.b16 %v161, %v160
    %v176 = vpack.c.b16 %v163, %v162
    %v177 = vpack.c.b16 %v165, %v164
    %v178 = vpack.c.b16 %v167, %v166
    %v179 = vpack.c.b16 %v169, %v168
    %v180 = vpack.c.b16 %v171, %v170
    %v181 = vpack.c.b16 %v173, %v172
    %190 = vmatpush.bf16.msra.mxu0 %v181
    %191 = vmatpush.bf16.msra.mxu0 %v180
    %192 = vmatpush.bf16.msra.mxu0 %v179
    %193 = vmatpush.bf16.msra.mxu0 %v178
    %194 = vmatpush.bf16.msra.mxu0 %v177
    %195 = vmatpush.bf16.msra.mxu0 %v176
    %196 = vmatpush.bf16.msra.mxu0 %v175
    %197 = vmatpush.bf16.msra.mxu0 %v174
    %198 = vmatmul.bf16.gmra.mxu0 %v121
    %v199 = vpop.f32.mrf.mxu0
    %v200 = vadd.f32 %v140, %v199
    %v201 = vpop.f32.mrf.mxu0
    %202 = vdwg.mxu0
    %v203 = vmax.f32 %v200, 0.0
    %v204 = vpack.c.bf16 %v203, %v203
    %v205 = vld [vmem:[#allocation8] sm:$0xf]
    %v206 = vld [vmem:[#allocation8 + $0x4] sm:$0xf]
    %v207 = vld [vmem:[#allocation8 + $0x8] sm:$0xf]
    %v208 = vld [vmem:[#allocation8 + $0xc] sm:$0xf]
    %v209 = vld [vmem:[#allocation8 + $0x10] sm:$0xf]
    %v210 = vld [vmem:[#allocation8 + $0x14] sm:$0xf]
    %v211 = vld [vmem:[#allocation8 + $0x18] sm:$0xf]
    %v212 = vld [vmem:[#allocation8 + $0x1c] sm:$0xf]
    %v213 = vld [vmem:[#allocation8 + $0x20] sm:$0xf]
    %v214 = vld [vmem:[#allocation8 + $0x24] sm:$0xf]
    %v215 = vld [vmem:[#allocation8 + $0x28] sm:$0xf]
    %v216 = vld [vmem:[#allocation8 + $0x2c] sm:$0xf]
    %v217 = vld [vmem:[#allocation8 + $0x30] sm:$0xf]
    %v218 = vld [vmem:[#allocation8 + $0x34] sm:$0xf]
    %v219 = vld [vmem:[#allocation8 + $0x38] sm:$0xf]
    %v220 = vld [vmem:[#allocation8 + $0x3c] sm:$0xf]
    %v221 = vld [vmem:[%s6] sm:$0x1]
    %v223 = vperm.slane %v221, 0
    %v241 = vunpack.c.l.b16 %v205
    %v242 = vunpack.c.l.b16 %v206
    %v243 = vunpack.c.l.b16 %v207
    %v244 = vunpack.c.l.b16 %v208
    %v245 = vunpack.c.l.b16 %v209
    %v246 = vunpack.c.l.b16 %v210
    %v247 = vunpack.c.l.b16 %v211
    %v248 = vunpack.c.l.b16 %v212
    %v249 = vunpack.c.l.b16 %v213
    %v250 = vunpack.c.l.b16 %v214
    %v251 = vunpack.c.l.b16 %v215
    %v252 = vunpack.c.l.b16 %v216
    %v253 = vunpack.c.l.b16 %v217
    %v254 = vunpack.c.l.b16 %v218
    %v255 = vunpack.c.l.b16 %v219
    %v256 = vunpack.c.l.b16 %v220
    %v257 = vpack.c.b16 %v242, %v241
    %v258 = vpack.c.b16 %v244, %v243
    %v259 = vpack.c.b16 %v246, %v245
    %v260 = vpack.c.b16 %v248, %v247
    %v261 = vpack.c.b16 %v250, %v249
    %v262 = vpack.c.b16 %v252, %v251
    %v263 = vpack.c.b16 %v254, %v253
    %v264 = vpack.c.b16 %v256, %v255
    %273 = vmatpush.bf16.msra.mxu0 %v264
    %274 = vmatpush.bf16.msra.mxu0 %v263
    %275 = vmatpush.bf16.msra.mxu0 %v262
    %276 = vmatpush.bf16.msra.mxu0 %v261
    %277 = vmatpush.bf16.msra.mxu0 %v260
    %278 = vmatpush.bf16.msra.mxu0 %v259
    %279 = vmatpush.bf16.msra.mxu0 %v258
    %280 = vmatpush.bf16.msra.mxu0 %v257
    %281 = vmatmul.bf16.gmra.mxu0 %v204
    %v282 = vpop.f32.mrf.mxu0
    %v283 = vadd.f32 %v223, %v282
    %v284 = vpop.f32.mrf.mxu0
    %285 = vdwg.mxu0
    %v286 = vpack.c.bf16 %v283, %v283
    %287 = vst [vmem:[#allocation10] sm:$0xf] %v286
    // Predicated region
    $region46: #{tpu_custom_call.1} parent=1 // pred_check
      _
    $region47: #{tpu_custom_call.1} parent=1 // pred_check_branch
      %289 = sbr.rel (0) target = $region49
    $region48: #{tpu_custom_call.1} parent=1 // pred_region
      %291 = vsyncadd [#allocation4], 0
      %s293 = sshll.u32 [#allocation10], 4
      %s294 = int_to_ptr.vmem [resolvable:$true] %s293
      %s295 = sshll.u32 %s7, 4
      %s296 = int_to_ptr.hbm [resolvable:$true] %s295
      %298 = dma.vmem_to_hbm [thread:$0]  %s294, 64, %s296, [#allocation4]
    $region49: #{tpu_custom_call.1} parent=1 // pred_fallthru
      _
    // Predicated region
    $region50: #{tpu_custom_call.1} parent=1 // pred_check
      _
    $region51: #{tpu_custom_call.1} parent=1 // pred_check_branch
      %300 = sbr.rel (0) target = $region53
    $region52: #{tpu_custom_call.1} parent=1 // pred_region
      %302 = dma.done [#allocation4], 64
    $region53: #{tpu_custom_call.1} parent=1 // pred_fallthru
      _
    %303 = vsyncpa [#allocation3], 1
    %304 = vsyncpa [#allocation6], 1
    %305 = vsyncpa [#allocation9], 1
    %306 = vsyncpa [#allocation4], 1

</llo_original>
